<compile_context>
chip_gen: v5e
topology: v5e:2x2
jax: 0.10.0
libtpu: 0.0.40
codegen_flags: <defaults>
</compile_context>

<pallas_src>
import jax
import jax.numpy as jnp
from jax.experimental import pallas as pl
from jax.experimental.pallas import tpu as pltpu


# ---------------------------------------------------------------------------
# Path 1 (default): single HBM -> HBM DMA, bypassing VMEM entirely.
# ---------------------------------------------------------------------------
def _dma_copy_kernel(x_hbm, o_hbm, sem):
    copy = pltpu.make_async_copy(x_hbm, o_hbm, sem)
    copy.start()
    copy.wait()


def _flatten_dma(x2, B, F, itemsize):
    return pl.pallas_call(
        _dma_copy_kernel,
        out_shape=jax.ShapeDtypeStruct((B, F), x2.dtype),
        in_specs=[pl.BlockSpec(memory_space=pl.ANY)],
        out_specs=pl.BlockSpec(memory_space=pl.ANY),
        scratch_shapes=[pltpu.SemaphoreType.DMA(())],
        compiler_params=pltpu.CompilerParams(has_side_effects=True),
        cost_estimate=pl.CostEstimate(
            flops=0, transcendentals=0, bytes_accessed=2 * B * F * itemsize),
    )(x2)


# ---------------------------------------------------------------------------
# Path 2: lane/sublane-dense pipelined VMEM copy (BlockSpec auto-pipelining).
# ---------------------------------------------------------------------------
def _copy_kernel(x_ref, o_ref):
    o_ref[...] = x_ref[...]


def _vmem_budget_bytes():
    """Per-generation (target_tile_bytes, vmem_limit_bytes)."""
    try:
        cap = pltpu.get_tpu_info().vmem_capacity_bytes
    except Exception:  # no query available -> assume v7x-safe (64 MiB) limits
        cap = 64 * 1024 * 1024
    if cap >= 96 * 1024 * 1024:                      # v5e / v6e: 128 MiB VMEM
        return 8 * 1024 * 1024, 64 * 1024 * 1024
    return 4 * 1024 * 1024, 40 * 1024 * 1024         # v7x: 64 MiB VMEM


def _pick_tiles(B: int, F: int, itemsize: int, target_tile_bytes: int):
    """Choose (TB, TF): lane-dense, sublane-dense for the dtype, VMEM-budgeted."""
    pack = max(8, 32 // max(1, itemsize))   # 8 f32, 16 bf16/fp16, 32 int8/fp8
    row_bytes = F * itemsize

    if F <= 128 or pack * row_bytes <= target_tile_bytes:
        # Whole contiguous rows per block; grow TB toward the byte budget.
        TF = F
        rows = (target_tile_bytes // max(1, row_bytes)) // pack * pack
        rows = max(pack, rows)
        TB = B if B <= rows else rows        # full-extent or pack-multiple
    else:
        # F too wide for whole rows: minimal sublane tile, wide 128-mult lanes.
        TB = B if B <= pack else pack
        tf = (target_tile_bytes // max(1, TB * itemsize)) // 128 * 128
        TF = F if F <= tf else max(128, tf)

    # v7x megacore: guarantee >= 2 blocks along a parallel axis for inputs
    # big enough to be worth splitting across the two TensorCores.
    if (B * F * itemsize > 2 * 1024 * 1024) and TB >= B and TF >= F:
        if B >= 2 * pack:
            TB = max(pack, ((B // 2) // pack) * pack)
        elif F >= 256:
            TF = max(128, ((F // 2) // 128) * 128)
    return TB, TF


def _flatten_tiled(x2, B, F, itemsize):
    target_tile_bytes, vmem_limit = _vmem_budget_bytes()
    TB, TF = _pick_tiles(B, F, itemsize, target_tile_bytes)
    grid = (pl.cdiv(B, TB), pl.cdiv(F, TF))
    return pl.pallas_call(
        _copy_kernel,
        out_shape=jax.ShapeDtypeStruct((B, F), x2.dtype),
        grid_spec=pltpu.PrefetchScalarGridSpec(
            num_scalar_prefetch=0,
            grid=grid,
            in_specs=[pl.BlockSpec((TB, TF), lambda i, j: (i, j))],
            out_specs=pl.BlockSpec((TB, TF), lambda i, j: (i, j)),
        ),
        compiler_params=pltpu.CompilerParams(
            dimension_semantics=("parallel", "parallel"),
            vmem_limit_bytes=vmem_limit,
        ),
        cost_estimate=pl.CostEstimate(
            flops=0, transcendentals=0, bytes_accessed=2 * B * F * itemsize),
    )(x2)


# ---------------------------------------------------------------------------
# Public wrapper (matches Flatten.forward semantics).
# ---------------------------------------------------------------------------
def flatten(x: jax.Array, *, mode: str = "dma") -> jax.Array:
    """Flatten (B, ...) -> (B, prod(rest)). mode: 'dma' (default) or 'tiled'."""
    B = x.shape[0]
    F = 1
    for d in x.shape[1:]:
        F *= d
    itemsize = jnp.dtype(x.dtype).itemsize

    # Metadata-only for a contiguous row-major array: this IS the flatten.
    # TODO(synk): if x ever arrives sharded on a trailing dim, the reshape is
    # no longer metadata-only and needs explicit cross-shard handling.
    x2 = x.reshape(B, F)

    if mode == "dma":
        return _flatten_dma(x2, B, F, itemsize)
    return _flatten_tiled(x2, B, F, itemsize)


if __name__ == "__main__":
    key = jax.random.PRNGKey(0)

    # Primary case, matching the module's intended NCHW use.
    B, C, H, W = 2, 4, 16, 16
    x = jax.random.normal(key, (B, C, H, W), dtype=jnp.float32)
    ref = x.reshape(B, C * H * W)

    out = jax.block_until_ready(flatten(x))                      # DMA path
    assert out.shape == (B, C * H * W), out.shape
    assert out.dtype == x.dtype
    assert jnp.array_equal(out, ref), "DMA path mismatch vs reference flatten"

    out_t = jax.block_until_ready(flatten(x, mode="tiled"))      # tiled path
    assert jnp.array_equal(out_t, ref), "tiled path mismatch vs reference"

    # Ragged case: non-128-multiple F, B not a sublane multiple.
    x_r = jax.random.normal(jax.random.PRNGKey(1), (10, 3, 5, 7), jnp.float32)
    ref_r = x_r.reshape(10, -1)
    assert jnp.array_equal(jax.block_until_ready(flatten(x_r)), ref_r)
    assert jnp.array_equal(
        jax.block_until_ready(flatten(x_r, mode="tiled")), ref_r)

    # bf16 case: exercises the dtype-aware sublane tile on the tiled path.
    x_b = jax.random.normal(jax.random.PRNGKey(2), (32, 4, 8, 8)).astype(
        jnp.bfloat16)
    ref_b = x_b.reshape(32, -1)
    assert jnp.array_equal(
        jax.block_until_ready(flatten(x_b, mode="tiled")), ref_b)
    assert jnp.array_equal(jax.block_until_ready(flatten(x_b)), ref_b)

    print("KERNEL_OK")
</pallas_src>

<mosaic_0001>
module attributes {stable_mosaic.version = 11 : i64} {
  func.func @_dma_copy_kernel(%arg0: memref<2x1024xf32, #tpu.memory_space<any>>, %arg1: memref<2x1024xf32, #tpu.memory_space<any>>, %arg2: memref<!tpu.dma_semaphore, #tpu.memory_space<semaphore_mem>>) attributes {dimension_semantics = [], scalar_prefetch = 0 : i64, scratch_operands = 1 : i64, tpu.core_type = #tpu.core_type<tc>} {
    tpu.enqueue_dma source(%arg0 : memref<2x1024xf32, #tpu.memory_space<any>>) target(%arg1 : memref<2x1024xf32, #tpu.memory_space<any>>) target_semaphore(%arg2 : memref<!tpu.dma_semaphore, #tpu.memory_space<semaphore_mem>>)
    tpu.wait_dma2 semaphore(%arg2 : memref<!tpu.dma_semaphore, #tpu.memory_space<semaphore_mem>>) src(%arg0 : memref<2x1024xf32, #tpu.memory_space<any>>) dst(%arg1 : memref<2x1024xf32, #tpu.memory_space<any>>)
    return
  }
}

</mosaic_0001>

<llo_original>
// kernel: tpu_custom_call.1
$region0: #{tpu_custom_call.1}
  #allocation0 [shape = 'u32[]', space=smem, size = 0x4, offset = 0x4, fixed_abs, tag = 'smem constant byte address 0x4 - core index']
  #allocation1 [shape = 'u32[72,128]{1,0:T(1,128)}', space=vmem, size = 0x9000, scoped, tag = 'internal scratch']
  #allocation2 [shape = 's32[1]{0}', space=sflag, size = 0x4, scoped, tag = 'scratch operand']
  #allocation3 [shape = 's32[]', space=sflag, size = 0x4, offset = 0, fixed_abs, tag = 'sflag constant byte address 0x0 - dummy sync flag']
  #allocation4 [shape = 'u32[0]{0}', space=smem, size = 0, offset = 0, fixed_abs, tag = 'smem constant byte address 0x0 - null']
  %s0 = inlined_call_operand.hbm [shape: f32[2,1024], index: 0, kind: input, shape index: {}]
  %s1 = inlined_call_operand.hbm [shape: f32[2,1024], index: 1, kind: output, shape index: {}]
  %s2 = sld [smem:[#allocation0]]
  $region2: #{tpu_custom_call.1} parent=0
    _
  %s4 = ssub.s32 1, %s2
  %s5 = scalar_select 0, %s4, %s2
  %s7 = sshll.u32 1, 14
  %s8 = sxor.u32 4294967295, %s7
  %s10 = sshll.u32 %s0, 4
  %s11 = int_to_ptr.hbm [resolvable:$true] %s10
  %s12 = sshll.u32 %s1, 4
  %s13 = int_to_ptr.hbm [resolvable:$true] %s12
  %16 = dma.general %s11, 256, %s13, [#allocation2], [#allocation3], [#allocation4], 0, 0
  %s17 = smul.u32 2, 1
  %s18 = smul.u32 %s17, 8
  %s19 = sshll.u32 %s18, 4
  %20 = dma.done [#allocation2], %s19
  %21 = vsyncmov [#allocation2]
  %s22 = vpop.sfrf %21
  %p23 = scmp.eq.s32.totalorder %s22, 0
  %p24 = pneg %p23
  %26 = shalt.err (%p24)

</llo_original>
